<compile_context>
chip_gen: v7x
topology: tpu7x:2x2x1
jax: 0.10.0
libtpu: 0.0.40
codegen_flags: <defaults>
</compile_context>

<pallas_src>
import jax
import jax.numpy as jnp
from jax.experimental import pallas as pl
from jax.experimental.pallas import tpu as pltpu


LANE = 128          # lane-dim padding target
TILE_ROW = 256      # row-panel tile (adjacency streamed as (TILE_ROW, N) panels)
TILE_2D = 512       # tile for the 2-D (huge-N) reduction-grid fallback


def _round_up(x, m):
    return (x + m - 1) // m * m


def _vmem_capacity_bytes():
    try:
        return int(pltpu.get_tpu_info().vmem_capacity_bytes)
    except Exception:
        return 64 * 1024 * 1024   # conservative default (v7x per-TC VMEM)


_VMEM_CAP = _vmem_capacity_bytes()
VMEM_LIMIT = int(_VMEM_CAP * 0.85)    # scoped-VMEM request; leaves Mosaic scratch headroom
VMEM_BUDGET = int(_VMEM_CAP * 0.75)   # budget used by the "auto" path selector


def _divisor_tile(n_pad, preferred):
    """Largest multiple of LANE <= preferred that divides n_pad."""
    t = min(_round_up(preferred, LANE), n_pad)
    while n_pad % t != 0:
        t -= LANE
    return max(t, LANE)


# ---------------------------------------------------------------------------
# VMEM footprint estimates (path selection)
# ---------------------------------------------------------------------------
def _fused_vmem_bytes(n_pad, h_pad):
    adj = n_pad * n_pad * 2                        # bf16 adjacency, Buffered(1)
    h0 = n_pad * h_pad * 2                         # bf16 layer0, Buffered(1)
    out = 2 * n_pad * h_pad * 4                    # f32 running h / output
    wts = 2 * (h_pad * h_pad * 2 + h_pad * 4)      # pipelined per-layer W'/shift'
    tmps = 2 * n_pad * h_pad * 4                   # f32 agg + epilogue temporaries
    return int((adj + h0 + out + wts + tmps) * 1.1) + (2 << 20)


def _rowpanel_vmem_bytes(n_pad, h_pad, tm):
    adj = 2 * tm * n_pad * 2                       # double-buffered bf16 row panel
    h = n_pad * h_pad * 2                          # resident bf16 h, Buffered(1)
    res = 2 * tm * h_pad * 2
    out = 2 * tm * h_pad * 2
    wts = h_pad * h_pad * 2 + h_pad * 4            # Buffered(1)
    tmps = 2 * tm * h_pad * 4                      # f32 agg + epilogue temporaries
    return int((adj + h + res + out + wts + tmps) * 1.1) + (2 << 20)


# ---------------------------------------------------------------------------
# Pallas kernels
# ---------------------------------------------------------------------------
def _fc0_kernel(x_ref, w_ref, shift_ref, o_ref):
    """h = relu(x @ W' + shift')   (BN folded into W'/shift')."""
    h = jnp.dot(x_ref[...], w_ref[...], preferred_element_type=jnp.float32)
    h = h + shift_ref[...]
    o_ref[...] = jnp.maximum(h, 0.0).astype(o_ref.dtype)


def _gconv_fused_kernel(adj_ref, h0_ref, w_ref, shift_ref, o_ref):
    """All graph-conv layers in one call; grid = (num_layers,).

    adj / h0 / output block indices are constant so the bf16 adjacency and
    layer0 are DMA'd once and stay VMEM-resident; the f32 running activation
    lives in o_ref (written back to HBM only after the last layer); per-layer
    folded weights stream in via the layer grid axis.
    """
    l = pl.program_id(0)

    @pl.when(l == 0)
    def _():
        o_ref[...] = h0_ref[...].astype(jnp.float32)

    # Aggregation: A @ h  (bf16 x bf16 -> f32 accumulate on the MXU).
    h_in = o_ref[...].astype(jnp.bfloat16)
    agg = jnp.dot(adj_ref[...], h_in, preferred_element_type=jnp.float32)
    # Linear (BN folded) + ReLU + residual (layer_[0]); epilogue stays f32.
    h = jnp.dot(agg.astype(jnp.bfloat16), w_ref[...],
                preferred_element_type=jnp.float32)
    h = h + shift_ref[...]
    h = jnp.maximum(h, 0.0)
    h = h + h0_ref[...].astype(jnp.float32)
    o_ref[...] = h


def _gconv_layer_rowpanel_kernel(a_ref, h_ref, res_ref, w_ref, shift_ref, o_ref):
    """One layer, grid=(N/tm,): adjacency streamed as (tm, N) row panels,
    full h and folded W'/shift' resident; whole row's A@h + epilogue per step."""
    agg = jnp.dot(a_ref[...], h_ref[...], preferred_element_type=jnp.float32)
    h = jnp.dot(agg.astype(jnp.bfloat16), w_ref[...],
                preferred_element_type=jnp.float32)
    h = h + shift_ref[...]
    h = jnp.maximum(h, 0.0)
    h = h + res_ref[...].astype(jnp.float32)
    o_ref[...] = h.astype(o_ref.dtype)


def _gconv_layer_tiled2d_kernel(a_ref, h_ref, res_ref, w_ref, shift_ref,
                                o_ref, acc_ref):
    """One layer, grid=(N/tm, N/tk) (reduction last), for N where the full h
    does not fit VMEM.  (tm, H) f32 accumulator in VMEM scratch; epilogue on
    the final k step."""
    k = pl.program_id(1)

    @pl.when(k == 0)
    def _():
        acc_ref[...] = jnp.zeros_like(acc_ref)

    acc_ref[...] += jnp.dot(a_ref[...], h_ref[...],
                            preferred_element_type=jnp.float32)

    @pl.when(k == pl.num_programs(1) - 1)
    def _():
        h = jnp.dot(acc_ref[...].astype(jnp.bfloat16), w_ref[...],
                    preferred_element_type=jnp.float32)
        h = h + shift_ref[...]
        h = jnp.maximum(h, 0.0)
        h = h + res_ref[...].astype(jnp.float32)
        o_ref[...] = h.astype(o_ref.dtype)


# ---------------------------------------------------------------------------
# pallas_call wrappers
# ---------------------------------------------------------------------------
def fc0_bn_relu(x, w, shift):
    n_pad, c_pad = x.shape
    h_pad = w.shape[1]
    tm = _divisor_tile(n_pad, TILE_2D)
    return pl.pallas_call(
        _fc0_kernel,
        out_shape=jax.ShapeDtypeStruct((n_pad, h_pad), jnp.bfloat16),
        grid_spec=pltpu.PrefetchScalarGridSpec(
            num_scalar_prefetch=0,
            grid=(n_pad // tm,),
            in_specs=[
                pl.BlockSpec((tm, c_pad), lambda i: (i, 0)),
                pl.BlockSpec((c_pad, h_pad), lambda i: (0, 0),
                             pipeline_mode=pl.Buffered(1)),
                pl.BlockSpec((1, h_pad), lambda i: (0, 0),
                             pipeline_mode=pl.Buffered(1)),
            ],
            out_specs=pl.BlockSpec((tm, h_pad), lambda i: (i, 0)),
        ),
        compiler_params=pltpu.CompilerParams(
            dimension_semantics=("parallel",),
            vmem_limit_bytes=VMEM_LIMIT,
        ),
        cost_estimate=pl.CostEstimate(
            flops=int(2 * n_pad * c_pad * h_pad), transcendentals=0,
            bytes_accessed=int(n_pad * c_pad * 2 + c_pad * h_pad * 2
                               + n_pad * h_pad * 2)),
    )(x, w, shift)


def gconv_layers_fused(adj, h0, w_stack, shift_stack):
    # TODO(synk): on v7x the layer grid axis is serial so this uses one of the
    # two TensorCores; a 2-way row split with cross-core h exchange
    # (VMEM_SHARED + core_barrier) would recover the second MXU.
    n_pad, h_pad = h0.shape
    num_layers = w_stack.shape[0]
    flops = 2 * num_layers * (n_pad * n_pad * h_pad + n_pad * h_pad * h_pad)
    bytes_acc = (n_pad * n_pad * 2 + n_pad * h_pad * 2 + n_pad * h_pad * 4
                 + num_layers * (h_pad * h_pad * 2 + h_pad * 4))
    return pl.pallas_call(
        _gconv_fused_kernel,
        out_shape=jax.ShapeDtypeStruct((n_pad, h_pad), jnp.float32),
        grid_spec=pltpu.PrefetchScalarGridSpec(
            num_scalar_prefetch=0,
            grid=(num_layers,),
            in_specs=[
                pl.BlockSpec((n_pad, n_pad), lambda l: (0, 0),
                             pipeline_mode=pl.Buffered(1)),               # adj (resident)
                pl.BlockSpec((n_pad, h_pad), lambda l: (0, 0),
                             pipeline_mode=pl.Buffered(1)),               # layer0 (resident)
                pl.BlockSpec((None, h_pad, h_pad), lambda l: (l, 0, 0)),  # W'_l (pipelined)
                pl.BlockSpec((None, 1, h_pad), lambda l: (l, 0, 0)),      # shift'_l
            ],
            out_specs=pl.BlockSpec((n_pad, h_pad), lambda l: (0, 0)),     # resident running h
        ),
        compiler_params=pltpu.CompilerParams(
            dimension_semantics=("arbitrary",),
            vmem_limit_bytes=VMEM_LIMIT,
        ),
        cost_estimate=pl.CostEstimate(flops=int(flops), transcendentals=0,
                                      bytes_accessed=int(bytes_acc)),
    )(adj, h0, w_stack, shift_stack)


def gconv_layer_rowpanel(adj, h, res, w, shift):
    n_pad = adj.shape[0]
    h_pad = w.shape[1]
    tm = _divisor_tile(n_pad, TILE_ROW)
    flops = 2 * (n_pad * n_pad * h_pad + n_pad * h_pad * h_pad)
    bytes_acc = (n_pad * n_pad * 2 + 3 * n_pad * h_pad * 2
                 + h_pad * h_pad * 2 + h_pad * 4)
    return pl.pallas_call(
        _gconv_layer_rowpanel_kernel,
        out_shape=jax.ShapeDtypeStruct((n_pad, h_pad), jnp.bfloat16),
        grid_spec=pltpu.PrefetchScalarGridSpec(
            num_scalar_prefetch=0,
            grid=(n_pad // tm,),
            in_specs=[
                pl.BlockSpec((tm, n_pad), lambda i: (i, 0)),              # adj row panel
                pl.BlockSpec((n_pad, h_pad), lambda i: (0, 0),
                             pipeline_mode=pl.Buffered(1)),               # full h (resident)
                pl.BlockSpec((tm, h_pad), lambda i: (i, 0)),              # residual (layer0)
                pl.BlockSpec((h_pad, h_pad), lambda i: (0, 0),
                             pipeline_mode=pl.Buffered(1)),               # folded W'
                pl.BlockSpec((1, h_pad), lambda i: (0, 0),
                             pipeline_mode=pl.Buffered(1)),               # folded shift'
            ],
            out_specs=pl.BlockSpec((tm, h_pad), lambda i: (i, 0)),
        ),
        compiler_params=pltpu.CompilerParams(
            dimension_semantics=("parallel",),
            vmem_limit_bytes=VMEM_LIMIT,
        ),
        cost_estimate=pl.CostEstimate(flops=int(flops), transcendentals=0,
                                      bytes_accessed=int(bytes_acc)),
    )(adj, h, res, w, shift)


def gconv_layer_tiled2d(adj, h, res, w, shift):
    n_pad = adj.shape[0]
    h_pad = w.shape[1]
    tm = tk = _divisor_tile(n_pad, TILE_2D)
    flops = 2 * (n_pad * n_pad * h_pad + n_pad * h_pad * h_pad)
    bytes_acc = (n_pad * n_pad * 2 + (n_pad // tm) * n_pad * h_pad * 2
                 + 2 * n_pad * h_pad * 2 + h_pad * h_pad * 2 + h_pad * 4)
    return pl.pallas_call(
        _gconv_layer_tiled2d_kernel,
        out_shape=jax.ShapeDtypeStruct((n_pad, h_pad), jnp.bfloat16),
        grid_spec=pltpu.PrefetchScalarGridSpec(
            num_scalar_prefetch=0,
            grid=(n_pad // tm, n_pad // tk),
            in_specs=[
                pl.BlockSpec((tm, tk), lambda i, k: (i, k)),              # adj tile
                pl.BlockSpec((tk, h_pad), lambda i, k: (k, 0)),           # h tile (reduction)
                pl.BlockSpec((tm, h_pad), lambda i, k: (i, 0)),           # residual (layer0)
                pl.BlockSpec((h_pad, h_pad), lambda i, k: (0, 0),
                             pipeline_mode=pl.Buffered(1)),               # folded W'
                pl.BlockSpec((1, h_pad), lambda i, k: (0, 0),
                             pipeline_mode=pl.Buffered(1)),               # folded shift'
            ],
            out_specs=pl.BlockSpec((tm, h_pad), lambda i, k: (i, 0)),
            scratch_shapes=[pltpu.VMEM((tm, h_pad), jnp.float32)],
        ),
        compiler_params=pltpu.CompilerParams(
            dimension_semantics=("parallel", "arbitrary"),
            vmem_limit_bytes=VMEM_LIMIT,
        ),
        cost_estimate=pl.CostEstimate(flops=int(flops), transcendentals=0,
                                      bytes_accessed=int(bytes_acc)),
    )(adj, h, res, w, shift)


# ---------------------------------------------------------------------------
# Glue (plain JAX): BN folding, normalized dense adjacency, padding
# ---------------------------------------------------------------------------
def bn_fold_into_linear(w, b, gamma, beta, running_mean, running_var, eps=1e-5):
    """Fold eval-mode BatchNorm1d into the preceding Linear: y = x@W' + shift'."""
    scale = gamma / jnp.sqrt(running_var + eps)
    shift = beta - running_mean * scale
    return w * scale[None, :], b * scale + shift


def build_norm_adj(edge_index, n, n_pad):
    """Densified, symmetrically-normalized adjacency (padded rows/cols = 0).

    Mirrors the reference exactly: A[col[e], row[e]] = 1/sqrt(d[col]*d[row])
    with d = degree(col); duplicate edges sum; inf/nan -> 0.
    """
    # TODO(synk): genuinely sparse graphs should use block-sparse aggregation
    # (per-output-tile nonzero-block lists via scalar prefetch) instead of a
    # dense O(N^2) adjacency; kept dense here for clarity at these scales.
    row, col = edge_index[0], edge_index[1]
    d = jnp.zeros((n,), jnp.float32).at[col].add(1.0)
    d_norm_in = jnp.sqrt(1.0 / d[col])
    d_norm_out = jnp.sqrt(1.0 / d[row])
    value = d_norm_in * d_norm_out
    value = jnp.nan_to_num(value, nan=0.0, posinf=0.0, neginf=0.0)
    return jnp.zeros((n_pad, n_pad), jnp.float32).at[col, row].add(value)


def _pad2(a, rows, cols):
    return jnp.pad(a, ((0, rows - a.shape[0]), (0, cols - a.shape[1])))


# ---------------------------------------------------------------------------
# Forward pass (prepare once, apply per call)
# ---------------------------------------------------------------------------
def prepare_gconv(edge_index, params, num_layers, n, path="auto"):
    """Hoisted, cacheable preprocessing: adjacency densification + BN folding
    + padding.  Callers with a static graph/params should reuse the result."""
    c, h_dim = params["fc0_w"].shape
    c_pad = _round_up(c, LANE)
    h_pad = _round_up(h_dim, LANE)
    n128 = _round_up(n, LANE)

    if path == "auto":
        if _fused_vmem_bytes(n128, h_pad) <= VMEM_BUDGET:
            path = "fused"
        else:
            tm = _divisor_tile(_round_up(n, TILE_ROW), TILE_ROW)
            if _rowpanel_vmem_bytes(_round_up(n, tm), h_pad, tm) <= VMEM_BUDGET:
                path = "rowpanel"
            else:
                path = "tiled2d"

    if path == "fused":
        n_pad = n128                               # lane-width padding only
    elif path == "rowpanel":
        n_pad = _round_up(n, min(TILE_ROW, n128))
    else:
        n_pad = _round_up(n, min(TILE_2D, _round_up(n, LANE)))

    adj = build_norm_adj(edge_index, n, n_pad).astype(jnp.bfloat16)

    # fc0 + BN0 folded.  Dropout is identity in eval mode.
    w0, s0 = bn_fold_into_linear(params["fc0_w"], params["fc0_b"],
                                 *params["bn"][0])
    w0_p = _pad2(w0, c_pad, h_pad).astype(jnp.bfloat16)
    s0_p = jnp.pad(s0, (0, h_pad - h_dim)).astype(jnp.float32)[None, :]

    # Per-layer Linear + BN folded.
    ws, ss = [], []
    for l in range(num_layers):
        w, b = params["conv"][l]
        wf, sf = bn_fold_into_linear(w, b, *params["bn"][l + 1])
        ws.append(_pad2(wf, h_pad, h_pad).astype(jnp.bfloat16))
        ss.append(jnp.pad(sf, (0, h_pad - h_dim)).astype(jnp.float32)[None, :])

    return dict(path=path, n=n, n_pad=n_pad, c_pad=c_pad, h_dim=h_dim,
                h_pad=h_pad, num_layers=num_layers, adj=adj, w0=w0_p, s0=s0_p,
                ws=ws, ss=ss,
                w_stack=jnp.stack(ws) if num_layers else None,
                s_stack=jnp.stack(ss) if num_layers else None)


def gconv_apply(x, prep):
    n, n_pad = prep["n"], prep["n_pad"]
    x_p = _pad2(x, n_pad, prep["c_pad"]).astype(jnp.bfloat16)
    h0 = fc0_bn_relu(x_p, prep["w0"], prep["s0"])   # (n_pad, h_pad) bf16 == layer_[0]

    L = prep["num_layers"]
    if L == 0:
        out = h0
    elif prep["path"] == "fused":
        out = gconv_layers_fused(prep["adj"], h0, prep["w_stack"], prep["s_stack"])
    elif prep["path"] == "rowpanel":
        # h round-trips HBM in bf16 between layers (bandwidth over precision).
        h = h0
        for l in range(L):
            h = gconv_layer_rowpanel(prep["adj"], h, h0, prep["ws"][l], prep["ss"][l])
        out = h
    else:
        h = h0
        for l in range(L):
            h = gconv_layer_tiled2d(prep["adj"], h, h0, prep["ws"][l], prep["ss"][l])
        out = h
    return out[:n, :prep["h_dim"]].astype(jnp.float32)


def gconv_forward(x, edge_index, params, num_layers, path="auto"):
    """Eval-mode GConv forward.  path in {"auto", "fused", "rowpanel", "tiled2d"}."""
    prep = prepare_gconv(edge_index, params, num_layers, x.shape[0], path)
    return gconv_apply(x, prep)


# ---------------------------------------------------------------------------
# Parameters + pure-JAX f32 reference (sanity check)
# ---------------------------------------------------------------------------
def init_params(key, in_channels, hidden_channels, num_layers):
    ks = jax.random.split(key, 4 * (num_layers + 1) + 2)
    i = 0
    params = {}
    params["fc0_w"] = jax.random.normal(ks[i], (in_channels, hidden_channels)) * 0.1; i += 1
    params["fc0_b"] = jax.random.normal(ks[i], (hidden_channels,)) * 0.1; i += 1
    params["bn"] = []
    for _ in range(num_layers + 1):
        gamma = 1.0 + 0.1 * jax.random.normal(ks[i], (hidden_channels,)); i += 1
        beta = 0.1 * jax.random.normal(ks[i], (hidden_channels,)); i += 1
        rmean = 0.1 * jax.random.normal(ks[i], (hidden_channels,)); i += 1
        rvar = 0.5 + jnp.abs(jax.random.normal(ks[i], (hidden_channels,))); i += 1
        params["bn"].append((gamma, beta, rmean, rvar))
    params["conv"] = []
    k2 = jax.random.split(jax.random.fold_in(key, 7), 2 * num_layers)
    for l in range(num_layers):
        w = jax.random.normal(k2[2 * l], (hidden_channels, hidden_channels)) * 0.1
        b = jax.random.normal(k2[2 * l + 1], (hidden_channels,)) * 0.1
        params["conv"].append((w, b))
    return params


def gconv_reference(x, edge_index, params, num_layers):
    n = x.shape[0]
    adj = build_norm_adj(edge_index, n, n)

    def bn(h, p, eps=1e-5):
        gamma, beta, rmean, rvar = p
        return (h - rmean) / jnp.sqrt(rvar + eps) * gamma + beta

    h = x @ params["fc0_w"] + params["fc0_b"]
    h = jnp.maximum(bn(h, params["bn"][0]), 0.0)
    h0 = h
    for l in range(num_layers):
        w, b = params["conv"][l]
        h = adj @ h
        h = h @ w + b
        h = jnp.maximum(bn(h, params["bn"][l + 1]), 0.0)
        h = h + h0
    return h


# ---------------------------------------------------------------------------
if __name__ == "__main__":
    key = jax.random.PRNGKey(0)
    N = 16              # nodes
    IN_C = 8            # in_channels
    HIDDEN = 32         # hidden_channels
    NUM_LAYERS = 2
    E = 48              # edges

    kx, ke, kp = jax.random.split(key, 3)
    x = jax.random.normal(kx, (N, IN_C), dtype=jnp.float32)
    edge_index = jax.random.randint(ke, (2, E), 0, N, dtype=jnp.int32)
    params = init_params(kp, IN_C, HIDDEN, NUM_LAYERS)

    out_fused = jax.block_until_ready(
        gconv_forward(x, edge_index, params, NUM_LAYERS, path="fused"))
    out_rowp = jax.block_until_ready(
        gconv_forward(x, edge_index, params, NUM_LAYERS, path="rowpanel"))
    out_2d = jax.block_until_ready(
        gconv_forward(x, edge_index, params, NUM_LAYERS, path="tiled2d"))
    ref = gconv_reference(x, edge_index, params, NUM_LAYERS)

    for out in (out_fused, out_rowp, out_2d):
        assert out.shape == (N, HIDDEN)
        assert jnp.all(jnp.isfinite(out))
        # bf16 matmul operands (f32 accumulation) -> loose tolerance vs f32 ref.
        assert float(jnp.max(jnp.abs(out - ref))) < 0.25
    assert float(jnp.max(jnp.abs(out_fused - out_rowp))) < 0.1
    assert float(jnp.max(jnp.abs(out_rowp - out_2d))) < 0.1
    print("KERNEL_OK")
</pallas_src>

<mosaic_0001>
module attributes {stable_mosaic.version = 11 : i64} {
  func.func @_fc0_kernel(%arg0: i32, %arg1: memref<128x128xbf16, #tpu.memory_space<vmem>>, %arg2: memref<128x128xbf16, #tpu.memory_space<vmem>>, %arg3: memref<1x128xf32, #tpu.memory_space<vmem>>, %arg4: memref<128x128xbf16, #tpu.memory_space<vmem>>) attributes {dimension_semantics = [#tpu.dimension_semantics<parallel>], iteration_bounds = array<i64: 1>, scalar_prefetch = 0 : i64, scratch_operands = 0 : i64, tpu.core_type = #tpu.core_type<tc>, window_params = [{transform_indices = @transform_0, window_bounds = array<i64: 128, 128>}, {pipeline_mode = #tpu.pipeline_mode<synchronous>, transform_indices = @transform_1, window_bounds = array<i64: 128, 128>}, {pipeline_mode = #tpu.pipeline_mode<synchronous>, transform_indices = @transform_2, window_bounds = array<i64: 1, 128>}, {transform_indices = @transform_3, window_bounds = array<i64: 128, 128>}]} {
    %c0 = arith.constant 0 : index
    %c0_0 = arith.constant 0 : index
    %0 = vector.load %arg1[%c0, %c0_0] : memref<128x128xbf16, #tpu.memory_space<vmem>>, vector<128x128xbf16>
    %c0_1 = arith.constant 0 : index
    %c0_2 = arith.constant 0 : index
    %1 = vector.load %arg2[%c0_1, %c0_2] : memref<128x128xbf16, #tpu.memory_space<vmem>>, vector<128x128xbf16>
    %cst = arith.constant dense<0.000000e+00> : vector<128x128xf32>
    %2 = tpu.matmul %0, %1, %cst {dimension_numbers = #tpu.dot_dimension_numbers<[1], [0], [0], [1], [0, 0, 1, 1], [], []>} : vector<128x128xbf16>, vector<128x128xbf16>, vector<128x128xf32> -> vector<128x128xf32>
    %c0_3 = arith.constant 0 : index
    %c0_4 = arith.constant 0 : index
    %3 = vector.load %arg3[%c0_3, %c0_4] : memref<1x128xf32, #tpu.memory_space<vmem>>, vector<1x128xf32>
    %4 = vector.broadcast %3 : vector<1x128xf32> to vector<128x128xf32>
    %5 = arith.addf %2, %4 : vector<128x128xf32>
    %cst_5 = arith.constant 0.000000e+00 : f32
    %6 = vector.broadcast %cst_5 : f32 to vector<128x128xf32>
    %7 = arith.maximumf %5, %6 : vector<128x128xf32>
    %8 = arith.truncf %7 : vector<128x128xf32> to vector<128x128xbf16>
    %c0_6 = arith.constant 0 : index
    %c0_7 = arith.constant 0 : index
    %9 = vector.load %arg4[%c0_6, %c0_7] : memref<128x128xbf16, #tpu.memory_space<vmem>>, vector<128x128xbf16>
    tpu.vector_store %arg4[%c0_6, %c0_7], %8 {strides = array<i32>} : memref<128x128xbf16, #tpu.memory_space<vmem>>, vector<128x128xbf16>,
    return
  }
  func.func @transform_0(%arg0: i32) -> (i32, i32) {
    %c0_i32 = arith.constant 0 : i32
    %c0_i32_0 = arith.constant 0 : i32
    return %arg0, %c0_i32 : i32, i32
  }
  func.func @transform_1(%arg0: i32) -> (i32, i32) {
    %c0_i32 = arith.constant 0 : i32
    %c0_i32_0 = arith.constant 0 : i32
    %c0_i32_1 = arith.constant 0 : i32
    return %c0_i32, %c0_i32_0 : i32, i32
  }
  func.func @transform_2(%arg0: i32) -> (i32, i32) {
    %c0_i32 = arith.constant 0 : i32
    %c0_i32_0 = arith.constant 0 : i32
    %c0_i32_1 = arith.constant 0 : i32
    return %c0_i32, %c0_i32_0 : i32, i32
  }
  func.func @transform_3(%arg0: i32) -> (i32, i32) {
    %c0_i32 = arith.constant 0 : i32
    %c0_i32_0 = arith.constant 0 : i32
    return %arg0, %c0_i32 : i32, i32
  }
}

</mosaic_0001>

<llo_original>
// kernel: tpu_custom_call.1
$region0: #{tpu_custom_call.1}
  #allocation0 [shape = 'u32[]', space=smem, size = 0x4, offset = 0x4, fixed_abs, tag = 'smem constant byte address 0x4 - core index']
  #allocation1 [shape = 'u32[144,128]{1,0:T(1,128)}', space=vmem, size = 0x12000, scoped, tag = 'internal scratch']
  %s0 = inlined_call_operand.hbm [shape: bf16[128,128], index: 0, kind: input, shape index: {}]
  %s1 = inlined_call_operand.hbm [shape: bf16[128,128], index: 1, kind: input, shape index: {}]
  %s2 = inlined_call_operand.vmem [shape: f32[1,128], index: 2, kind: input, shape index: {}]
  %s3 = inlined_call_operand.hbm [shape: bf16[128,128], index: 3, kind: output, shape index: {}]
  %s4 = sld [smem:[#allocation0]]
  $region30: #{tpu_custom_call.1} parent=0
    _
  %s6 = ssub.s32 1, %s4
  %s7 = scalar_select 0, %s6, %s4
  $region1: #{tpu_custom_call.1} parent=0
    #allocation2 [shape = 'u8[32768]{0}', space=vmem, size = 0x8000, scoped, tag = 'input window, operand 0, single buffered']
    #allocation3 [shape = 's32[1]{0}', space=sflag, size = 0x4, scoped, tag = 'scoped memory for tpu_custom_call.1']
    #allocation4 [shape = 's32[1]{0}', space=sflag, size = 0x4, scoped, tag = 'scoped memory for tpu_custom_call.1']
    #allocation5 [shape = 'u8[32768]{0}', space=vmem, size = 0x8000, scoped, tag = 'input window, operand 1, single buffered']
    #allocation6 [shape = 's32[1]{0}', space=sflag, size = 0x4, scoped, tag = 'scoped memory for tpu_custom_call.1']
    #allocation7 [shape = 'u8[32768]{0}', space=vmem, size = 0x8000, scoped, tag = 'output window, operand 0, single buffered']
    %8 = vsyncpa [#allocation3], 0
    %9 = vsyncpa [#allocation6], 0
    %10 = vsyncpa [#allocation4], 0
    // Predicated region
    $region2: #{tpu_custom_call.1} parent=1 // pred_check
      _
    $region3: #{tpu_custom_call.1} parent=1 // pred_check_branch
      %12 = sbr.rel (0) target = $region5
    $region4: #{tpu_custom_call.1} parent=1 // pred_region
      %s14 = ssub.s32 1024, 1024
      %15 = vsyncadd [#allocation3], %s14
      %s16 = sshll.u32 [#allocation2], 4
      %s17 = int_to_ptr.vmem [resolvable:$true] %s16
      %22 = dma.hbm_to_vmem [thread:$0]  %s0, 1024, %s17, [#allocation3], 64, 64, 4
    $region5: #{tpu_custom_call.1} parent=1 // pred_fallthru
      _
    // Predicated region
    $region6: #{tpu_custom_call.1} parent=1 // pred_check
      _
    $region7: #{tpu_custom_call.1} parent=1 // pred_check_branch
      %24 = sbr.rel (0) target = $region9
    $region8: #{tpu_custom_call.1} parent=1 // pred_region
      %s26 = ssub.s32 1024, 1024
      %27 = vsyncadd [#allocation6], %s26
      %s28 = sshll.u32 [#allocation5], 4
      %s29 = int_to_ptr.vmem [resolvable:$true] %s28
      %34 = dma.hbm_to_vmem [thread:$0]  %s1, 1024, %s29, [#allocation6], 64, 64, 4
    $region9: #{tpu_custom_call.1} parent=1 // pred_fallthru
      _
    // Predicated region
    $region10: #{tpu_custom_call.1} parent=1 // pred_check
      _
    $region11: #{tpu_custom_call.1} parent=1 // pred_check_branch
      %36 = sbr.rel (0) target = $region13
    $region12: #{tpu_custom_call.1} parent=1 // pred_region
      _
    $region13: #{tpu_custom_call.1} parent=1 // pred_fallthru
      _
    // Predicated region
    $region14: #{tpu_custom_call.1} parent=1 // pred_check
      _
    $region15: #{tpu_custom_call.1} parent=1 // pred_check_branch
      %38 = sbr.rel (0) target = $region17
    $region16: #{tpu_custom_call.1} parent=1 // pred_region
      %39 = dma.done [#allocation3], 1024
    $region17: #{tpu_custom_call.1} parent=1 // pred_fallthru
      _
    // Predicated region
    $region18: #{tpu_custom_call.1} parent=1 // pred_check
      _
    $region19: #{tpu_custom_call.1} parent=1 // pred_check_branch
      %41 = sbr.rel (0) target = $region21
    $region20: #{tpu_custom_call.1} parent=1 // pred_region
      %42 = dma.done [#allocation6], 1024
    $region21: #{tpu_custom_call.1} parent=1 // pred_fallthru
      _
    %v44 = vld [vmem:[#allocation2] sm:$0xf]
    %v45 = vld [vmem:[#allocation2 + $0x4] sm:$0xf]
    %v46 = vld [vmem:[#allocation2 + $0x8] sm:$0xf]
    %v47 = vld [vmem:[#allocation2 + $0xc] sm:$0xf]
    %v48 = vld [vmem:[#allocation2 + $0x10] sm:$0xf]
    %v49 = vld [vmem:[#allocation2 + $0x14] sm:$0xf]
    %v50 = vld [vmem:[#allocation2 + $0x18] sm:$0xf]
    %v51 = vld [vmem:[#allocation2 + $0x1c] sm:$0xf]
    %v52 = vld [vmem:[#allocation2 + $0x20] sm:$0xf]
    %v53 = vld [vmem:[#allocation2 + $0x24] sm:$0xf]
    %v54 = vld [vmem:[#allocation2 + $0x28] sm:$0xf]
    %v55 = vld [vmem:[#allocation2 + $0x2c] sm:$0xf]
    %v56 = vld [vmem:[#allocation2 + $0x30] sm:$0xf]
    %v57 = vld [vmem:[#allocation2 + $0x34] sm:$0xf]
    %v58 = vld [vmem:[#allocation2 + $0x38] sm:$0xf]
    %v59 = vld [vmem:[#allocation2 + $0x3c] sm:$0xf]
    %v60 = vld [vmem:[#allocation5] sm:$0xf]
    %v61 = vld [vmem:[#allocation5 + $0x4] sm:$0xf]
    %v62 = vld [vmem:[#allocation5 + $0x8] sm:$0xf]
    %v63 = vld [vmem:[#allocation5 + $0xc] sm:$0xf]
    %v64 = vld [vmem:[#allocation5 + $0x10] sm:$0xf]
    %v65 = vld [vmem:[#allocation5 + $0x14] sm:$0xf]
    %v66 = vld [vmem:[#allocation5 + $0x18] sm:$0xf]
    %v67 = vld [vmem:[#allocation5 + $0x1c] sm:$0xf]
    %v68 = vld [vmem:[#allocation5 + $0x20] sm:$0xf]
    %v69 = vld [vmem:[#allocation5 + $0x24] sm:$0xf]
    %v70 = vld [vmem:[#allocation5 + $0x28] sm:$0xf]
    %v71 = vld [vmem:[#allocation5 + $0x2c] sm:$0xf]
    %v72 = vld [vmem:[#allocation5 + $0x30] sm:$0xf]
    %v73 = vld [vmem:[#allocation5 + $0x34] sm:$0xf]
    %v74 = vld [vmem:[#allocation5 + $0x38] sm:$0xf]
    %v75 = vld [vmem:[#allocation5 + $0x3c] sm:$0xf]
    %v76 = vld [vmem:[%s2] sm:$0x1]
    %v78 = vlaneseq
    %v79 = vshrl.u32 %v78, 7
    %v80 = vsub.s32 0, %v79
    %v81 = vrot.slane %v76, %v80
    %v99 = vunpack.c.l.b16 %v44
    %v100 = vunpack.c.l.b16 %v45
    %v101 = vunpack.c.l.b16 %v46
    %v102 = vunpack.c.l.b16 %v47
    %v103 = vunpack.c.l.b16 %v48
    %v104 = vunpack.c.l.b16 %v49
    %v105 = vunpack.c.l.b16 %v50
    %v106 = vunpack.c.l.b16 %v51
    %v107 = vunpack.c.l.b16 %v52
    %v108 = vunpack.c.l.b16 %v53
    %v109 = vunpack.c.l.b16 %v54
    %v110 = vunpack.c.l.b16 %v55
    %v111 = vunpack.c.l.b16 %v56
    %v112 = vunpack.c.l.b16 %v57
    %v113 = vunpack.c.l.b16 %v58
    %v114 = vunpack.c.l.b16 %v59
    %v115 = vpack.c.b16 %v100, %v99
    %v116 = vpack.c.b16 %v102, %v101
    %v117 = vpack.c.b16 %v104, %v103
    %v118 = vpack.c.b16 %v106, %v105
    %v119 = vpack.c.b16 %v108, %v107
    %v120 = vpack.c.b16 %v110, %v109
    %v121 = vpack.c.b16 %v112, %v111
    %v122 = vpack.c.b16 %v114, %v113
    %v147 = vunpack.c.l.b16 %v60
    %v148 = vunpack.c.l.b16 %v61
    %v149 = vunpack.c.l.b16 %v62
    %v150 = vunpack.c.l.b16 %v63
    %v151 = vunpack.c.l.b16 %v64
    %v152 = vunpack.c.l.b16 %v65
    %v153 = vunpack.c.l.b16 %v66
    %v154 = vunpack.c.l.b16 %v67
    %v155 = vunpack.c.l.b16 %v68
    %v156 = vunpack.c.l.b16 %v69
    %v157 = vunpack.c.l.b16 %v70
    %v158 = vunpack.c.l.b16 %v71
    %v159 = vunpack.c.l.b16 %v72
    %v160 = vunpack.c.l.b16 %v73
    %v161 = vunpack.c.l.b16 %v74
    %v162 = vunpack.c.l.b16 %v75
    %v163 = vpack.c.b16 %v148, %v147
    %v164 = vpack.c.b16 %v150, %v149
    %v165 = vpack.c.b16 %v152, %v151
    %v166 = vpack.c.b16 %v154, %v153
    %v167 = vpack.c.b16 %v156, %v155
    %v168 = vpack.c.b16 %v158, %v157
    %v169 = vpack.c.b16 %v160, %v159
    %v170 = vpack.c.b16 %v162, %v161
    %179 = vmatprep.subr.bf16.mxu0 0
    %180 = vmatpush1.bf16.msra.mxu0 %v163
    %181 = vmatprep.subr.bf16.mxu0 0
    %182 = vmatpush1.bf16.msra.mxu0 %v164
    %183 = vmatprep.subr.bf16.mxu0 0
    %184 = vmatpush1.bf16.msra.mxu0 %v165
    %185 = vmatprep.subr.bf16.mxu0 0
    %186 = vmatpush1.bf16.msra.mxu0 %v166
    %187 = vmatprep.subr.bf16.mxu0 0
    %188 = vmatpush1.bf16.msra.mxu0 %v167
    %189 = vmatprep.subr.bf16.mxu0 0
    %190 = vmatpush1.bf16.msra.mxu0 %v168
    %191 = vmatprep.subr.bf16.mxu0 0
    %192 = vmatpush1.bf16.msra.mxu0 %v169
    %193 = vmatprep.subr.bf16.mxu0 0
    %194 = vmatpush1.bf16.msra.mxu0 %v170
    %195 = vmatprep.subr.bf16.mxu0 0
    %196 = vmatpush1.bf16.msra.mxu0 0
    %197 = vmatprep.subr.bf16.mxu0 0
    %198 = vmatpush1.bf16.msra.mxu0 0
    %199 = vmatprep.subr.bf16.mxu0 0
    %200 = vmatpush1.bf16.msra.mxu0 0
    %201 = vmatprep.subr.bf16.mxu0 0
    %202 = vmatpush1.bf16.msra.mxu0 0
    %203 = vmatprep.subr.bf16.mxu0 0
    %204 = vmatpush1.bf16.msra.mxu0 0
    %205 = vmatprep.subr.bf16.mxu0 0
    %206 = vmatpush1.bf16.msra.mxu0 0
    %207 = vmatprep.subr.bf16.mxu0 0
    %208 = vmatpush1.bf16.msra.mxu0 0
    %209 = vmatprep.subr.bf16.mxu0 0
    %210 = vmatpush1.bf16.msra.mxu0 0
    %211 = vmatprep.mubr.bf16.mxu0 0
    %212 = vmatmul.mubr.bf16.gmra.mrb[0].mxu0 %v115
    %v213 = vpop.f32.mrb[0].mxu0
    %v214 = vadd.f32 %v81, %v213
    %v215 = vpop.f32.mrb[0].mxu0
    %v216 = vpop.f32.mrb[0].mxu0
    %v217 = vadd.f32 %v81, %v216
    %v218 = vpop.f32.mrb[0].mxu0
    %219 = vmatprep.mubr.bf16.mxu0 0
    %220 = vmatmul.mubr.bf16.gmra.mrb[0].mxu0 %v116
    %v221 = vpop.f32.mrb[0].mxu0
    %v222 = vadd.f32 %v81, %v221
    %v223 = vpop.f32.mrb[0].mxu0
    %v224 = vpop.f32.mrb[0].mxu0
    %v225 = vadd.f32 %v81, %v224
    %v226 = vpop.f32.mrb[0].mxu0
    %227 = vmatprep.mubr.bf16.mxu0 0
    %228 = vmatmul.mubr.bf16.gmra.mrb[0].mxu0 %v117
    %v229 = vpop.f32.mrb[0].mxu0
    %v230 = vadd.f32 %v81, %v229
    %v231 = vpop.f32.mrb[0].mxu0
    %v232 = vpop.f32.mrb[0].mxu0
    %v233 = vadd.f32 %v81, %v232
    %v234 = vpop.f32.mrb[0].mxu0
    %235 = vmatprep.mubr.bf16.mxu0 0
    %236 = vmatmul.mubr.bf16.gmra.mrb[0].mxu0 %v118
    %v237 = vpop.f32.mrb[0].mxu0
    %v238 = vadd.f32 %v81, %v237
    %v239 = vpop.f32.mrb[0].mxu0
    %v240 = vpop.f32.mrb[0].mxu0
    %v241 = vadd.f32 %v81, %v240
    %v242 = vpop.f32.mrb[0].mxu0
    %243 = vmatprep.mubr.bf16.mxu0 0
    %244 = vmatmul.mubr.bf16.gmra.mrb[0].mxu0 %v119
    %v245 = vpop.f32.mrb[0].mxu0
    %v246 = vadd.f32 %v81, %v245
    %v247 = vpop.f32.mrb[0].mxu0
    %v248 = vpop.f32.mrb[0].mxu0
    %v249 = vadd.f32 %v81, %v248
    %v250 = vpop.f32.mrb[0].mxu0
    %251 = vmatprep.mubr.bf16.mxu0 0
    %252 = vmatmul.mubr.bf16.gmra.mrb[0].mxu0 %v120
    %v253 = vpop.f32.mrb[0].mxu0
    %v254 = vadd.f32 %v81, %v253
    %v255 = vpop.f32.mrb[0].mxu0
    %v256 = vpop.f32.mrb[0].mxu0
    %v257 = vadd.f32 %v81, %v256
    %v258 = vpop.f32.mrb[0].mxu0
    %259 = vmatprep.mubr.bf16.mxu0 0
    %260 = vmatmul.mubr.bf16.gmra.mrb[0].mxu0 %v121
    %v261 = vpop.f32.mrb[0].mxu0
    %v262 = vadd.f32 %v81, %v261
    %v263 = vpop.f32.mrb[0].mxu0
    %v264 = vpop.f32.mrb[0].mxu0
    %v265 = vadd.f32 %v81, %v264
    %v266 = vpop.f32.mrb[0].mxu0
    %267 = vmatprep.mubr.bf16.mxu0 0
    %268 = vmatmul.mubr.bf16.gmra.mrb[0].mxu0 %v122
    %v269 = vpop.f32.mrb[0].mxu0
    %v270 = vadd.f32 %v81, %v269
    %v271 = vpop.f32.mrb[0].mxu0
    %v272 = vpop.f32.mrb[0].mxu0
    %v273 = vadd.f32 %v81, %v272
    %v274 = vpop.f32.mrb[0].mxu0
    %275 = vdwg.mxu0
    %v276 = vmax.f32 %v214, 0.0
    %v277 = vmax.f32 %v217, 0.0
    %v278 = vmax.f32 %v222, 0.0
    %v279 = vmax.f32 %v225, 0.0
    %v280 = vmax.f32 %v230, 0.0
    %v281 = vmax.f32 %v233, 0.0
    %v282 = vmax.f32 %v238, 0.0
    %v283 = vmax.f32 %v241, 0.0
    %v284 = vmax.f32 %v246, 0.0
    %v285 = vmax.f32 %v249, 0.0
    %v286 = vmax.f32 %v254, 0.0
    %v287 = vmax.f32 %v257, 0.0
    %v288 = vmax.f32 %v262, 0.0
    %v289 = vmax.f32 %v265, 0.0
    %v290 = vmax.f32 %v270, 0.0
    %v291 = vmax.f32 %v273, 0.0
    %v292 = vpack.c.bf16 %v277, %v276
    %v293 = vpack.c.bf16 %v279, %v278
    %v294 = vpack.c.bf16 %v281, %v280
    %v295 = vpack.c.bf16 %v283, %v282
    %v296 = vpack.c.bf16 %v285, %v284
    %v297 = vpack.c.bf16 %v287, %v286
    %v298 = vpack.c.bf16 %v289, %v288
    %v299 = vpack.c.bf16 %v291, %v290
    %v308 = vunpack.c.l.b16 %v292
    %v309 = vunpack.c.h.b16 %v292
    %v310 = vunpack.c.l.b16 %v293
    %v311 = vunpack.c.h.b16 %v293
    %v312 = vunpack.c.l.b16 %v294
    %v313 = vunpack.c.h.b16 %v294
    %v314 = vunpack.c.l.b16 %v295
    %v315 = vunpack.c.h.b16 %v295
    %v316 = vunpack.c.l.b16 %v296
    %v317 = vunpack.c.h.b16 %v296
    %v318 = vunpack.c.l.b16 %v297
    %v319 = vunpack.c.h.b16 %v297
    %v320 = vunpack.c.l.b16 %v298
    %v321 = vunpack.c.h.b16 %v298
    %v322 = vunpack.c.l.b16 %v299
    %v323 = vunpack.c.h.b16 %v299
    %v324 = vpack.c.b16 %v308, %v308
    %v325 = vpack.c.b16 %v309, %v309
    %v326 = vpack.c.b16 %v310, %v310
    %v327 = vpack.c.b16 %v311, %v311
    %v328 = vpack.c.b16 %v312, %v312
    %v329 = vpack.c.b16 %v313, %v313
    %v330 = vpack.c.b16 %v314, %v314
    %v331 = vpack.c.b16 %v315, %v315
    %v332 = vpack.c.b16 %v316, %v316
    %v333 = vpack.c.b16 %v317, %v317
    %v334 = vpack.c.b16 %v318, %v318
    %v335 = vpack.c.b16 %v319, %v319
    %v336 = vpack.c.b16 %v320, %v320
    %v337 = vpack.c.b16 %v321, %v321
    %v338 = vpack.c.b16 %v322, %v322
    %v339 = vpack.c.b16 %v323, %v323
    %356 = vst [vmem:[#allocation7] sm:$0xf] %v324
    %357 = vst [vmem:[#allocation7 + $0x4] sm:$0xf] %v325
    %358 = vst [vmem:[#allocation7 + $0x8] sm:$0xf] %v326
    %359 = vst [vmem:[#allocation7 + $0xc] sm:$0xf] %v327
    %360 = vst [vmem:[#allocation7 + $0x10] sm:$0xf] %v328
    %361 = vst [vmem:[#allocation7 + $0x14] sm:$0xf] %v329
    %362 = vst [vmem:[#allocation7 + $0x18] sm:$0xf] %v330
    %363 = vst [vmem:[#allocation7 + $0x1c] sm:$0xf] %v331
    %364 = vst [vmem:[#allocation7 + $0x20] sm:$0xf] %v332
    %365 = vst [vmem:[#allocation7 + $0x24] sm:$0xf] %v333
    %366 = vst [vmem:[#allocation7 + $0x28] sm:$0xf] %v334
    %367 = vst [vmem:[#allocation7 + $0x2c] sm:$0xf] %v335
    %368 = vst [vmem:[#allocation7 + $0x30] sm:$0xf] %v336
    %369 = vst [vmem:[#allocation7 + $0x34] sm:$0xf] %v337
    %370 = vst [vmem:[#allocation7 + $0x38] sm:$0xf] %v338
    %371 = vst [vmem:[#allocation7 + $0x3c] sm:$0xf] %v339
    // Predicated region
    $region22: #{tpu_custom_call.1} parent=1 // pred_check
      _
    $region23: #{tpu_custom_call.1} parent=1 // pred_check_branch
      %373 = sbr.rel (0) target = $region25
    $region24: #{tpu_custom_call.1} parent=1 // pred_region
      %s375 = ssub.s32 1024, 1024
      %376 = vsyncadd [#allocation4], %s375
      %s377 = sshll.u32 [#allocation7], 4
      %s378 = int_to_ptr.vmem [resolvable:$true] %s377
      %383 = dma.vmem_to_hbm [thread:$0]  %s378, 1024, %s3, [#allocation4], 64, 64, 4
    $region25: #{tpu_custom_call.1} parent=1 // pred_fallthru
      _
    // Predicated region
    $region26: #{tpu_custom_call.1} parent=1 // pred_check
      _
    $region27: #{tpu_custom_call.1} parent=1 // pred_check_branch
      %385 = sbr.rel (0) target = $region29
    $region28: #{tpu_custom_call.1} parent=1 // pred_region
      %386 = dma.done [#allocation4], 1024
    $region29: #{tpu_custom_call.1} parent=1 // pred_fallthru
      _
    %387 = vsyncpa [#allocation3], 1
    %388 = vsyncpa [#allocation6], 1
    %389 = vsyncpa [#allocation4], 1

</llo_original>
